<compile_context>
chip_gen: v7x
topology: tpu7x:2x2x1
jax: 0.10.0
libtpu: 0.0.40
codegen_flags: <defaults>
</compile_context>

<pallas_src>
import functools

import jax
import jax.numpy as jnp
from jax.experimental import pallas as pl
from jax.experimental.pallas import tpu as pltpu


def _focal_loss_kernel(logits_ref, targets_ref, out_ref, *, alpha, gamma,
                       ignore_index, n_rows, reduce_in_kernel):
    x = logits_ref[...]                                     # (T, C) native dtype (f32/bf16)
    tgt = targets_ref[...]                                  # (T, 1) int32
    t, c = x.shape

    # Numerically stable softmax pieces.  Max on the native dtype (exact), upcast fused
    # into the subtraction -> only `shifted` and `e` are live (T, C) f32 temporaries.
    row_max = jnp.max(x, axis=-1, keepdims=True)            # (T, 1) native
    shifted = x.astype(jnp.float32) - row_max.astype(jnp.float32)   # (T, C) f32
    e = jnp.exp(shifted)                                     # (T, C) f32
    sumexp = jnp.sum(e, axis=-1, keepdims=True)              # (T, 1)

    # Target-class gather via one-hot mask (no dynamic gather on TPU).  Reuse `e` for the
    # "everything but the target class" mass -> no second exp pass, no 1 - pt cancellation.
    col = jax.lax.broadcasted_iota(jnp.int32, (t, c), 1)
    onehot = col == tgt                                       # (T, C) bool
    logit_t = jnp.sum(jnp.where(onehot, shifted, 0.0), axis=-1, keepdims=True)
    e_other = jnp.sum(jnp.where(onehot, 0.0, e), axis=-1, keepdims=True)
    # NOTE: if a bundle dump ever shows the XLU saturated by these three lane reductions,
    # the two sums can be offloaded to the idle MXU via a dot with a ones (C, 128) column.

    # Row validity: not ignore_index AND inside the real N (ragged last tile has garbage rows).
    row = pl.program_id(0) * t + jax.lax.broadcasted_iota(jnp.int32, (t, 1), 0)
    valid = (tgt != ignore_index) & (row < n_rows)

    ce = jnp.where(valid, jnp.maximum(jnp.log(sumexp) - logit_t, 0.0), 0.0)   # (T, 1)
    one_minus_pt = jnp.where(valid, e_other / sumexp, 0.0)                    # (T, 1), in [0, 1]

    if gamma == 2.0:                                          # default fast path
        w = one_minus_pt * one_minus_pt
    elif gamma == 1.0:
        w = one_minus_pt
    elif gamma == 0.0:
        w = jnp.ones_like(one_minus_pt)
    else:
        w = one_minus_pt ** gamma                             # base >= 0 by construction

    focal = alpha * w * ce                                    # (T, 1) per-row focal loss

    if reduce_in_kernel:
        # One lane-dense (8, 128) block per tile holding the partial sum (unmasked store).
        partial = jnp.sum(focal, keepdims=True)               # (1, 1)
        out_ref[...] = jnp.broadcast_to(partial, out_ref.shape).astype(out_ref.dtype)
    else:
        out_ref[...] = focal.astype(out_ref.dtype)


def _round_up(x, m):
    return ((x + m - 1) // m) * m


def focal_loss(logits, targets, alpha=1.0, gamma=2.0, reduction="mean", ignore_index=-100):
    """logits: (N, C) float (f32 or bf16); targets: (N,) int.  Matches FocalLoss.forward."""
    n, c = logits.shape
    itemsize = jnp.dtype(logits.dtype).itemsize

    # --- Tile sizing: account for input double-buffer AND the f32 intermediates. ---
    # Per row of tile: 2 input buffers (native dtype) + ~3 (T, C) f32 temporaries + slack.
    per_row_bytes = c * (2 * itemsize + 3 * 4) + 64
    budget_bytes = 12 * 1024 * 1024            # total VMEM plan; fits every generation
    tile_n = budget_bytes // per_row_bytes
    tile_n = max(32, min(4096, int(tile_n)))
    tile_n = (tile_n // 32) * 32               # multiple of 32: covers f32/bf16/int8 packing
    if n > 64:
        # v7x has 2 TensorCores: make sure the "parallel" grid axis has >= 2 steps.
        tile_n = min(tile_n, _round_up(-(-n // 2), 32))
    tile_n = min(tile_n, _round_up(n, 32))
    num_tiles = pl.cdiv(n, tile_n)

    targets_2d = targets.astype(jnp.int32).reshape(n, 1)

    reduce_in_kernel = reduction in ("mean", "sum")
    kernel = functools.partial(
        _focal_loss_kernel,
        alpha=float(alpha),
        gamma=float(gamma),
        ignore_index=int(ignore_index),
        n_rows=int(n),
        reduce_in_kernel=reduce_in_kernel,
    )

    in_specs = [
        pl.BlockSpec((tile_n, c), lambda i: (i, 0)),   # logits tile, classes on lanes
        pl.BlockSpec((tile_n, 1), lambda i: (i, 0)),   # targets column
    ]
    compiler_params = pltpu.CompilerParams(
        dimension_semantics=("parallel",),
        vmem_limit_bytes=32 * 1024 * 1024,             # explicit; plan stays well below this
    )

    if reduce_in_kernel:
        partials = pl.pallas_call(
            kernel,
            out_shape=jax.ShapeDtypeStruct((num_tiles * 8, 128), jnp.float32),
            grid=(num_tiles,),
            in_specs=in_specs,
            out_specs=pl.BlockSpec((8, 128), lambda i: (i, 0)),
            compiler_params=compiler_params,
        )(logits, targets_2d)
        total = jnp.sum(partials[::8, 0])              # one value per tile
        if reduction == "mean":
            # PyTorch module: reduction='none' CE then .mean() over ALL N rows.
            return total / n
        return total
    else:
        per_row = pl.pallas_call(
            kernel,
            out_shape=jax.ShapeDtypeStruct((n, 1), jnp.float32),
            grid=(num_tiles,),
            in_specs=in_specs,
            out_specs=pl.BlockSpec((tile_n, 1), lambda i: (i, 0)),
            compiler_params=compiler_params,
        )(logits, targets_2d)
        return per_row[:, 0]


def _focal_loss_ref(logits, targets, alpha=1.0, gamma=2.0, ignore_index=-100, reduction="mean"):
    logits = logits.astype(jnp.float32)
    lse = jax.scipy.special.logsumexp(logits, axis=-1)
    safe_t = jnp.where(targets == ignore_index, 0, targets)
    logit_t = jnp.take_along_axis(logits, safe_t[:, None], axis=-1)[:, 0]
    ce = jnp.where(targets == ignore_index, 0.0, lse - logit_t)
    pt = jnp.exp(-ce)
    focal = alpha * (1.0 - pt) ** gamma * ce
    if reduction == "mean":
        return jnp.mean(focal)
    if reduction == "sum":
        return jnp.sum(focal)
    return focal


if __name__ == "__main__":
    key = jax.random.PRNGKey(0)
    k1, k2, k3, k4, k5, k6, k7, k8 = jax.random.split(key, 8)

    # Case 1: small shapes (N=16, C=32), f32, ignore_index rows, mean / sum / none.
    N, C = 16, 32
    logits = jax.random.normal(k1, (N, C), dtype=jnp.float32)
    targets = jax.random.randint(k2, (N,), 0, C, dtype=jnp.int32)
    targets = targets.at[3].set(-100).at[7].set(-100)

    out = jax.block_until_ready(focal_loss(logits, targets))
    ref = _focal_loss_ref(logits, targets)
    assert jnp.allclose(out, ref, atol=1e-6, rtol=1e-5), (out, ref)

    out_sum = jax.block_until_ready(focal_loss(logits, targets, reduction="sum"))
    ref_sum = _focal_loss_ref(logits, targets, reduction="sum")
    assert jnp.allclose(out_sum, ref_sum, atol=1e-5, rtol=1e-5), (out_sum, ref_sum)

    out_none = jax.block_until_ready(focal_loss(logits, targets, reduction="none"))
    ref_none = _focal_loss_ref(logits, targets, reduction="none")
    assert jnp.allclose(out_none, ref_none, atol=1e-6, rtol=1e-5), (out_none, ref_none)

    # Case 2: ragged single-tile path (N not a multiple of 32), f32.
    N2, C2 = 50, 40
    logits2 = jax.random.normal(k3, (N2, C2), dtype=jnp.float32)
    targets2 = jax.random.randint(k4, (N2,), 0, C2, dtype=jnp.int32).at[5].set(-100)
    out2 = jax.block_until_ready(focal_loss(logits2, targets2))
    ref2 = _focal_loss_ref(logits2, targets2)
    assert jnp.allclose(out2, ref2, atol=1e-6, rtol=1e-5), (out2, ref2)

    # Case 3: multi-tile ragged path + non-integer gamma (generic pow branch).
    N3, C3 = 200, 48
    logits3 = jax.random.normal(k5, (N3, C3), dtype=jnp.float32)
    targets3 = jax.random.randint(k6, (N3,), 0, C3, dtype=jnp.int32).at[0].set(-100).at[99].set(-100)
    out3 = jax.block_until_ready(focal_loss(logits3, targets3, alpha=0.25, gamma=1.5))
    ref3 = _focal_loss_ref(logits3, targets3, alpha=0.25, gamma=1.5)
    assert jnp.allclose(out3, ref3, atol=1e-6, rtol=1e-4), (out3, ref3)

    # Case 4: bf16 input smoke test (kernel upcasts internally; same quantized inputs to ref).
    N4, C4 = 64, 128
    logits4 = jax.random.normal(k7, (N4, C4), dtype=jnp.float32).astype(jnp.bfloat16)
    targets4 = jax.random.randint(k8, (N4,), 0, C4, dtype=jnp.int32).at[10].set(-100)
    out4 = jax.block_until_ready(focal_loss(logits4, targets4))
    ref4 = _focal_loss_ref(logits4, targets4)
    assert jnp.allclose(out4, ref4, atol=1e-5, rtol=1e-4), (out4, ref4)

    print("KERNEL_OK")
</pallas_src>

<mosaic_0001>
module attributes {stable_mosaic.version = 11 : i64} {
  func.func @_focal_loss_kernel(%arg0: i32, %arg1: memref<32x32xf32, #tpu.memory_space<vmem>>, %arg2: memref<32x1xi32, #tpu.memory_space<vmem>>, %arg3: memref<8x128xf32, #tpu.memory_space<vmem>>) attributes {dimension_semantics = [#tpu.dimension_semantics<parallel>], iteration_bounds = array<i64: 1>, scalar_prefetch = 0 : i64, scratch_operands = 0 : i64, tpu.core_type = #tpu.core_type<tc>, window_params = [{transform_indices = @transform_0, window_bounds = array<i64: 32, 32>}, {transform_indices = @transform_1, window_bounds = array<i64: 32, 1>}, {transform_indices = @transform_2, window_bounds = array<i64: 8, 128>}]} {
    %c0 = arith.constant 0 : index
    %c0_0 = arith.constant 0 : index
    %0 = vector.load %arg1[%c0, %c0_0] : memref<32x32xf32, #tpu.memory_space<vmem>>, vector<32x32xf32>
    %c0_1 = arith.constant 0 : index
    %c0_2 = arith.constant 0 : index
    %1 = vector.load %arg2[%c0_1, %c0_2] : memref<32x1xi32, #tpu.memory_space<vmem>>, vector<32x1xi32>
    %cst = arith.constant dense<0xFF800000> : vector<32xf32>
    %2 = vector.multi_reduction <maximumf>, %0, %cst [1] : vector<32x32xf32> to vector<32xf32>
    %3 = vector.shape_cast %2 : vector<32xf32> to vector<32x1xf32>
    %4 = vector.broadcast %3 : vector<32x1xf32> to vector<32x32xf32>
    %5 = arith.subf %0, %4 : vector<32x32xf32>
    %6 = math.exp %5 : vector<32x32xf32>
    %cst_3 = arith.constant dense<0.000000e+00> : vector<32xf32>
    %7 = vector.multi_reduction <add>, %6, %cst_3 [1] : vector<32x32xf32> to vector<32xf32>
    %8 = vector.shape_cast %7 : vector<32xf32> to vector<32x1xf32>
    %9 = tpu.iota {dimensions = array<i32: 1>} : vector<32x32xi32>
    %10 = vector.broadcast %1 : vector<32x1xi32> to vector<32x32xi32>
    %11 = arith.cmpi eq, %9, %10 : vector<32x32xi32>
    %cst_4 = arith.constant 0.000000e+00 : f32
    %12 = vector.broadcast %cst_4 : f32 to vector<32x32xf32>
    %13 = arith.select %11, %5, %12 : vector<32x32xi1>, vector<32x32xf32>
    %cst_5 = arith.constant dense<0.000000e+00> : vector<32xf32>
    %14 = vector.multi_reduction <add>, %13, %cst_5 [1] : vector<32x32xf32> to vector<32xf32>
    %15 = vector.shape_cast %14 : vector<32xf32> to vector<32x1xf32>
    %cst_6 = arith.constant 0.000000e+00 : f32
    %16 = vector.broadcast %cst_6 : f32 to vector<32x32xf32>
    %17 = arith.select %11, %16, %6 : vector<32x32xi1>, vector<32x32xf32>
    %cst_7 = arith.constant dense<0.000000e+00> : vector<32xf32>
    %18 = vector.multi_reduction <add>, %17, %cst_7 [1] : vector<32x32xf32> to vector<32xf32>
    %19 = vector.shape_cast %18 : vector<32xf32> to vector<32x1xf32>
    %c32_i32 = arith.constant 32 : i32
    %20 = arith.muli %arg0, %c32_i32 : i32
    %21 = tpu.iota {dimensions = array<i32: 0>} : vector<32x1xi32>
    %22 = vector.broadcast %20 : i32 to vector<32x1xi32>
    %23 = arith.addi %22, %21 : vector<32x1xi32>
    %c-100_i32 = arith.constant -100 : i32
    %24 = vector.broadcast %c-100_i32 : i32 to vector<32x1xi32>
    %25 = arith.cmpi ne, %1, %24 : vector<32x1xi32>
    %c16_i32 = arith.constant 16 : i32
    %26 = vector.broadcast %c16_i32 : i32 to vector<32x1xi32>
    %27 = arith.cmpi slt, %23, %26 : vector<32x1xi32>
    %28 = arith.andi %25, %27 : vector<32x1xi1>
    %29 = math.log %8 : vector<32x1xf32>
    %30 = arith.subf %29, %15 : vector<32x1xf32>
    %cst_8 = arith.constant 0.000000e+00 : f32
    %31 = vector.broadcast %cst_8 : f32 to vector<32x1xf32>
    %32 = arith.maximumf %30, %31 : vector<32x1xf32>
    %cst_9 = arith.constant 0.000000e+00 : f32
    %33 = vector.broadcast %cst_9 : f32 to vector<32x1xf32>
    %34 = arith.select %28, %32, %33 : vector<32x1xi1>, vector<32x1xf32>
    %35 = arith.divf %19, %8 : vector<32x1xf32>
    %cst_10 = arith.constant 0.000000e+00 : f32
    %36 = vector.broadcast %cst_10 : f32 to vector<32x1xf32>
    %37 = arith.select %28, %35, %36 : vector<32x1xi1>, vector<32x1xf32>
    %38 = arith.mulf %37, %37 : vector<32x1xf32>
    %cst_11 = arith.constant 1.000000e+00 : f32
    %39 = vector.broadcast %cst_11 : f32 to vector<32x1xf32>
    %40 = arith.mulf %39, %38 : vector<32x1xf32>
    %41 = arith.mulf %40, %34 : vector<32x1xf32>
    %42 = vector.shape_cast %41 : vector<32x1xf32> to vector<1x32x1xf32>
    %cst_12 = arith.constant dense<0.000000e+00> : vector<1xf32>
    %43 = vector.multi_reduction <add>, %42, %cst_12 [1, 2] : vector<1x32x1xf32> to vector<1xf32>
    %44 = vector.shape_cast %43 : vector<1xf32> to vector<1x1x1xf32>
    %45 = vector.extract %44[0, 0, 0] : f32 from vector<1x1x1xf32>
    %46 = vector.broadcast %45 : f32 to vector<1x1xf32>
    %47 = vector.shape_cast %46 : vector<1x1xf32> to vector<1x1xf32>
    %48 = vector.broadcast %47 : vector<1x1xf32> to vector<8x128xf32>
    %c0_13 = arith.constant 0 : index
    %c0_14 = arith.constant 0 : index
    %49 = vector.load %arg3[%c0_13, %c0_14] : memref<8x128xf32, #tpu.memory_space<vmem>>, vector<8x128xf32>
    tpu.vector_store %arg3[%c0_13, %c0_14], %48 {strides = array<i32>} : memref<8x128xf32, #tpu.memory_space<vmem>>, vector<8x128xf32>,
    return
  }
  func.func @transform_0(%arg0: i32) -> (i32, i32) {
    %c0_i32 = arith.constant 0 : i32
    %c0_i32_0 = arith.constant 0 : i32
    return %arg0, %c0_i32 : i32, i32
  }
  func.func @transform_1(%arg0: i32) -> (i32, i32) {
    %c0_i32 = arith.constant 0 : i32
    %c0_i32_0 = arith.constant 0 : i32
    return %arg0, %c0_i32 : i32, i32
  }
  func.func @transform_2(%arg0: i32) -> (i32, i32) {
    %c0_i32 = arith.constant 0 : i32
    %c0_i32_0 = arith.constant 0 : i32
    return %arg0, %c0_i32 : i32, i32
  }
}

</mosaic_0001>

<llo_original>
// kernel: tpu_custom_call.1
$region0: #{tpu_custom_call.1}
  #allocation0 [shape = 'u32[]', space=smem, size = 0x4, offset = 0x4, fixed_abs, tag = 'smem constant byte address 0x4 - core index']
  #allocation1 [shape = 'u32[144,128]{1,0:T(1,128)}', space=vmem, size = 0x12000, scoped, tag = 'internal scratch']
  %s0 = inlined_call_operand.vmem [shape: f32[16,32], index: 0, kind: input, shape index: {}]
  %s1 = inlined_call_operand.vmem [shape: s32[16,1], index: 1, kind: input, shape index: {}]
  %s2 = inlined_call_operand.hbm [shape: f32[8,128], index: 2, kind: output, shape index: {}]
  %s3 = sld [smem:[#allocation0]]
  $region18: #{tpu_custom_call.1} parent=0
    _
  %s5 = ssub.s32 1, %s3
  %s6 = scalar_select 0, %s5, %s3
  $region1: #{tpu_custom_call.1} parent=0
    #allocation2 [shape = 'u8[4096]{0}', space=vmem, size = 0x1000, scoped, tag = 'output window, operand 0, single buffered']
    #allocation3 [shape = 's32[1]{0}', space=sflag, size = 0x4, scoped, tag = 'scoped memory for tpu_custom_call.1']
    %7 = vsyncpa [#allocation3], 0
    // Predicated region
    $region2: #{tpu_custom_call.1} parent=1 // pred_check
      _
    $region3: #{tpu_custom_call.1} parent=1 // pred_check_branch
      %9 = sbr.rel (0) target = $region5
    $region4: #{tpu_custom_call.1} parent=1 // pred_region
      _
    $region5: #{tpu_custom_call.1} parent=1 // pred_fallthru
      _
    // Predicated region
    $region6: #{tpu_custom_call.1} parent=1 // pred_check
      _
    $region7: #{tpu_custom_call.1} parent=1 // pred_check_branch
      %11 = sbr.rel (0) target = $region9
    $region8: #{tpu_custom_call.1} parent=1 // pred_region
      _
    $region9: #{tpu_custom_call.1} parent=1 // pred_fallthru
      _
    %v12 = vld [vmem:[%s0] sm:$0xff]
    %v13 = vld [vmem:[%s0 + $0x8] sm:$0xff]
    %v14 = vld [vmem:[%s0 + $0x10] sm:$0xff]
    %v15 = vld [vmem:[%s0 + $0x18] sm:$0xff]
    %v16 = vld [vmem:[%s1] sm:$0xff]
    %v17 = vld [vmem:[%s1 + $0x8] sm:$0xff]
    %v18 = vld [vmem:[%s1 + $0x10] sm:$0xff]
    %v19 = vld [vmem:[%s1 + $0x18] sm:$0xff]
    %vm20 = vcmask 261120
    %v21 = vsel %vm20, %v12, -inf
    %22 = vmax.xlane.f32.xlu0 %v21
    %v23 = vpop.xlane.xlu0 %22
    %v24 = vsel %vm20, %v13, -inf
    %25 = vmax.xlane.f32.xlu0 %v24
    %v26 = vpop.xlane.xlu0 %25
    %v27 = vsel %vm20, %v14, -inf
    %28 = vmax.xlane.f32.xlu0 %v27
    %v29 = vpop.xlane.xlu0 %28
    %v30 = vsel %vm20, %v15, -inf
    %31 = vmax.xlane.f32.xlu0 %v30
    %v32 = vpop.xlane.xlu0 %31
    %v33 = vsub.f32 %v12, %v23
    %v34 = vsub.f32 %v13, %v26
    %v35 = vsub.f32 %v14, %v29
    %v36 = vsub.f32 %v15, %v32
    %v37 = vmul.f32 %v33, 1.442695
    %v38 = vpow.pop %v37
    %v39 = vmul.f32 %v34, 1.442695
    %v40 = vpow.pop %v39
    %v41 = vmul.f32 %v35, 1.442695
    %v42 = vpow.pop %v41
    %v43 = vmul.f32 %v36, 1.442695
    %v44 = vpow.pop %v43
    %v45 = vsel %vm20, %v38, 0.0
    %46 = vadd.xlane.f32.xlu0 %v45
    %v47 = vpop.xlane.xlu0 %46
    %v48 = vsel %vm20, %v40, 0.0
    %49 = vadd.xlane.f32.xlu0 %v48
    %v50 = vpop.xlane.xlu0 %49
    %v51 = vsel %vm20, %v42, 0.0
    %52 = vadd.xlane.f32.xlu0 %v51
    %v53 = vpop.xlane.xlu0 %52
    %v54 = vsel %vm20, %v44, 0.0
    %55 = vadd.xlane.f32.xlu0 %v54
    %v56 = vpop.xlane.xlu0 %55
    %v57 = vlaneseq
    %v58 = vand.u32 %v57, 127
    %59 = vset.pattern.permute.xlu0 0
    %60 = vperm.xlu0 %59, %v16
    %v61 = vpop.permute.xlu0 %60
    %62 = vset.pattern.permute.xlu0 0
    %63 = vperm.xlu0 %62, %v17
    %v64 = vpop.permute.xlu0 %63
    %65 = vset.pattern.permute.xlu0 0
    %66 = vperm.xlu0 %65, %v18
    %v67 = vpop.permute.xlu0 %66
    %68 = vset.pattern.permute.xlu0 0
    %69 = vperm.xlu0 %68, %v19
    %v70 = vpop.permute.xlu0 %69
    %vm71 = vcmp.eq.s32.totalorder %v58, %v61
    %vm72 = vcmp.eq.s32.totalorder %v58, %v64
    %vm73 = vcmp.eq.s32.totalorder %v58, %v67
    %vm74 = vcmp.eq.s32.totalorder %v58, %v70
    %v75 = vsel %vm71, %v33, 0.0
    %v76 = vsel %vm72, %v34, 0.0
    %v77 = vsel %vm73, %v35, 0.0
    %v78 = vsel %vm74, %v36, 0.0
    %v79 = vsel %vm20, %v75, 0.0
    %80 = vadd.xlane.f32.xlu0 %v79
    %v81 = vpop.xlane.xlu0 %80
    %v82 = vsel %vm20, %v76, 0.0
    %83 = vadd.xlane.f32.xlu0 %v82
    %v84 = vpop.xlane.xlu0 %83
    %v85 = vsel %vm20, %v77, 0.0
    %86 = vadd.xlane.f32.xlu0 %v85
    %v87 = vpop.xlane.xlu0 %86
    %v88 = vsel %vm20, %v78, 0.0
    %89 = vadd.xlane.f32.xlu0 %v88
    %v90 = vpop.xlane.xlu0 %89
    %v91 = vsel %vm71, 0.0, %v38
    %v92 = vsel %vm72, 0.0, %v40
    %v93 = vsel %vm73, 0.0, %v42
    %v94 = vsel %vm74, 0.0, %v44
    %v95 = vsel %vm20, %v91, 0.0
    %96 = vadd.xlane.f32.xlu0 %v95
    %v97 = vpop.xlane.xlu0 %96
    %v98 = vsel %vm20, %v92, 0.0
    %99 = vadd.xlane.f32.xlu0 %v98
    %v100 = vpop.xlane.xlu0 %99
    %v101 = vsel %vm20, %v93, 0.0
    %102 = vadd.xlane.f32.xlu0 %v101
    %v103 = vpop.xlane.xlu0 %102
    %v104 = vsel %vm20, %v94, 0.0
    %105 = vadd.xlane.f32.xlu0 %v104
    %v106 = vpop.xlane.xlu0 %105
    %s107 = smul.u32 0, 32
    %v108 = vlaneseq
    %v109 = vshrl.u32 %v108, 7
    %v110 = vadd.s32 %v109, 8
    %v111 = vadd.s32 %v109, 16
    %v112 = vadd.s32 %v109, 24
    %v113 = vstv %s107
    %v114 = vadd.s32 %v113, %v109
    %v115 = vadd.s32 %v113, %v110
    %v116 = vadd.s32 %v113, %v111
    %v117 = vadd.s32 %v113, %v112
    %vm118 = vcmp.ne.s32.totalorder %v16, 4294967196
    %vm119 = vcmp.ne.s32.totalorder %v17, 4294967196
    %vm120 = vcmp.ne.s32.totalorder %v18, 4294967196
    %vm121 = vcmp.ne.s32.totalorder %v19, 4294967196
    %vm122 = vcmp.lt.s32.totalorder %v114, 16
    %vm123 = vcmp.lt.s32.totalorder %v115, 16
    %vm124 = vcmp.lt.s32.totalorder %v116, 16
    %vm125 = vcmp.lt.s32.totalorder %v117, 16
    %vm126 = vmand %vm118, %vm122
    %vm127 = vmand %vm119, %vm123
    %vm128 = vmand %vm120, %vm124
    %vm129 = vmand %vm121, %vm125
    %v130 = vlog2.pop %v47
    %v131 = vmul.f32 %v130, 0.6931472
    %v132 = vlog2.pop %v50
    %v133 = vmul.f32 %v132, 0.6931472
    %v134 = vlog2.pop %v53
    %v135 = vmul.f32 %v134, 0.6931472
    %v136 = vlog2.pop %v56
    %v137 = vmul.f32 %v136, 0.6931472
    %v138 = vsub.f32 %v131, %v81
    %v139 = vsub.f32 %v133, %v84
    %v140 = vsub.f32 %v135, %v87
    %v141 = vsub.f32 %v137, %v90
    %v142 = vmax.f32 %v138, 0.0
    %v143 = vmax.f32 %v139, 0.0
    %v144 = vmax.f32 %v140, 0.0
    %v145 = vmax.f32 %v141, 0.0
    %v146 = vsel %vm126, %v142, 0.0
    %v147 = vsel %vm127, %v143, 0.0
    %v148 = vsel %vm128, %v144, 0.0
    %v149 = vsel %vm129, %v145, 0.0
    %v150 = vrcp.pop %v47
    %v151 = vmul.f32 %v97, %v150
    %v152 = vrcp.pop %v50
    %v153 = vmul.f32 %v100, %v152
    %v154 = vrcp.pop %v53
    %v155 = vmul.f32 %v103, %v154
    %v156 = vrcp.pop %v56
    %v157 = vmul.f32 %v106, %v156
    %v158 = vsel %vm126, %v151, 0.0
    %v159 = vsel %vm127, %v153, 0.0
    %v160 = vsel %vm128, %v155, 0.0
    %v161 = vsel %vm129, %v157, 0.0
    %v162 = vmul.f32 %v158, %v158
    %v163 = vmul.f32 %v159, %v159
    %v164 = vmul.f32 %v160, %v160
    %v165 = vmul.f32 %v161, %v161
    %v166 = vmul.f32 %v162, %v146
    %v167 = vmul.f32 %v163, %v147
    %v168 = vmul.f32 %v164, %v148
    %v169 = vmul.f32 %v165, %v149
    %vm170 = vcmask 7168
    %v171 = vsel %vm170, %v166, 0.0
    %v172 = vsel %vm170, %v167, 0.0
    %v173 = vadd.f32 %v171, %v172
    %v174 = vsel %vm170, %v168, 0.0
    %v175 = vadd.f32 %v173, %v174
    %v176 = vsel %vm170, %v169, 0.0
    %v177 = vadd.f32 %v175, %v176
    %178 = vadd.xlane.f32.xlu0 %v177
    %v179 = vpop.xlane.xlu0 %178
    %v180 = vrot.slane %v179, 4
    %v181 = vadd.f32 %v179, %v180
    %v182 = vrot.slane %v181, 2
    %v183 = vadd.f32 %v181, %v182
    %v184 = vrot.slane %v183, 1
    %v185 = vadd.f32 %v183, %v184
    %s186 = vtos %v185
    %v187 = vstv %s186
    %188 = vst [vmem:[#allocation2] sm:$0xff] %v187
    // Predicated region
    $region10: #{tpu_custom_call.1} parent=1 // pred_check
      _
    $region11: #{tpu_custom_call.1} parent=1 // pred_check_branch
      %190 = sbr.rel (0) target = $region13
    $region12: #{tpu_custom_call.1} parent=1 // pred_region
      %s192 = ssub.s32 128, 128
      %193 = vsyncadd [#allocation3], %s192
      %s195 = sshll.u32 [#allocation2], 4
      %s196 = int_to_ptr.vmem [resolvable:$true] %s195
      %198 = dma.vmem_to_hbm [thread:$0]  %s196, 128, %s2, [#allocation3]
    $region13: #{tpu_custom_call.1} parent=1 // pred_fallthru
      _
    // Predicated region
    $region14: #{tpu_custom_call.1} parent=1 // pred_check
      _
    $region15: #{tpu_custom_call.1} parent=1 // pred_check_branch
      %200 = sbr.rel (0) target = $region17
    $region16: #{tpu_custom_call.1} parent=1 // pred_region
      %201 = dma.done [#allocation3], 128
    $region17: #{tpu_custom_call.1} parent=1 // pred_fallthru
      _
    %202 = vsyncpa [#allocation3], 1

</llo_original>
